<compile_context>
chip_gen: v7x
topology: tpu7x:2x2x1
jax: 0.10.0
libtpu: 0.0.40
codegen_flags: <defaults>
</compile_context>

<pallas_src>
import functools

import numpy as np

import jax
import jax.numpy as jnp
from jax.experimental import pallas as pl
from jax.experimental.pallas import tpu as pltpu


# ---------------------------------------------------------------------------
# Constant stencil matrices (built once on host, resident in VMEM as bf16).
# Convention: M[k_in, j_out] = coefficient of flat input element k for flat
# output element j, applied as  y = x_flat @ M.
# ---------------------------------------------------------------------------
def _band121(n):
    """[1,2,1] stencil with replicate (edge-clamped) padding, one axis."""
    m = np.zeros((n, n), np.float32)
    for j in range(n):
        m[max(j - 1, 0), j] += 1.0
        m[j, j] += 2.0
        m[min(j + 1, n - 1), j] += 1.0
    return m


def _pair_avg(n):
    """0.5*(x[j] + x[min(j+1, n-1)]): stride-1 pair average, replicate at edge."""
    m = np.zeros((n, n), np.float32)
    for j in range(n):
        m[j, j] += 0.5
        m[min(j + 1, n - 1), j] += 0.5
    return m


def _down2(n):
    """0.5*(x[2j] + x[2j+1]): stride-2 pair average."""
    m = np.zeros((n, n // 2), np.float32)
    for k in range(n):
        m[k, k // 2] = 0.5
    return m


def _make_stencils(H, W):
    # blur: separable ([1,2,1] x [1,2,1]) / 16 with replicate pad (equation 2)
    blur_m = np.kron(_band121(H), _band121(W)).astype(np.float32) / 16.0
    # denom: 2x2 stride-1 avg pool, replicate pad right/bottom (equation 7)
    pair_m = np.kron(_pair_avg(H), _pair_avg(W)).astype(np.float32)
    # final: 2x2 stride-2 avg pool (equation 8)
    down_m = np.kron(_down2(H), _down2(W)).astype(np.float32)
    # All entries are k/16, 0.25, 0.5 or 1.0 -> exactly representable in bf16.
    return (jnp.asarray(blur_m, dtype=jnp.bfloat16),
            jnp.asarray(pair_m, dtype=jnp.bfloat16),
            jnp.asarray(down_m, dtype=jnp.bfloat16))


# ---------------------------------------------------------------------------
# Precision-controlled GEMM: f32 activations split into bf16 hi/mid/lo parts,
# each multiplied on the native bf16 MXU path with f32 accumulation.
# 3 passes ~= f32-exact; 1 pass = fastest (bf16 rounding of the activations).
# ---------------------------------------------------------------------------
_GEMM_PASSES = 3


def _precise_dot(a_f32, m_bf16):
    acc = None
    rem = a_f32
    for _ in range(_GEMM_PASSES):
        part = rem.astype(jnp.bfloat16)
        rem = rem - part.astype(jnp.float32)
        d = jnp.dot(part, m_bf16, preferred_element_type=jnp.float32)
        acc = d if acc is None else acc + d
    return acc


# ---------------------------------------------------------------------------
# Kernel: one block of `tc` channel planes, each flattened to H*W lanes.
# ---------------------------------------------------------------------------
def _detail_pool_kernel(params_ref, x_ref, blur_ref, pair_ref, down_ref, o_ref,
                        *, asymmetric):
    """params_ref: SMEM (2,) = [2*|lambda|, |alpha|]; x_ref: (tc, H*W) f32;
    blur_ref/pair_ref: (H*W, H*W) bf16; down_ref: (H*W, H*W//4) bf16."""
    x = x_ref[...]
    two_lam = params_ref[0]
    alpha = params_ref[1]

    # equation 2: separable [1,2,1]x[1,2,1]/16 blur with replicate pad.
    blur = _precise_dot(x, blur_ref[...])

    # equations 5/6: ((d^2 + eps^2)^2)^|lambda| == exp(2|lambda| * log(d^2+eps^2))
    d = x - blur
    if asymmetric:
        d = jnp.maximum(d, 0.0)
    t = d * d + 1e-12                                   # eps = 1e-6
    e4 = jnp.exp(two_lam * jnp.log(t)) + alpha          # equation 4

    # equation 7: e4 / (2x2 stride-1 avg pool of e4, replicate pad).
    denom = _precise_dot(e4, pair_ref[...]) + 1e-8
    e7 = e4 / denom                                     # exact f32 divide

    # equation 8: 2x2 stride-2 avg pool of x * e7 -> lane-dense output block.
    o_ref[...] = _precise_dot(x * e7, down_ref[...]).astype(o_ref.dtype)


# ---------------------------------------------------------------------------
# Tiling policy
# ---------------------------------------------------------------------------
def _pick_tile(bc, hw, hwo):
    """Rows (channel planes) per grid step."""
    # per-row f32 working set: x + out (double-buffered) + ~8 temporaries
    row_bytes = (2 * hw + 2 * hwo + 8 * hw) * 4
    cap = int(min(1024, max(8, (20 * 1024 * 1024) // row_bytes)))
    if bc <= cap:
        tc = bc
    else:
        tc = 0
        for cand in range(cap - cap % 8, 7, -8):          # multiples of 8, descending
            if bc % cand == 0:
                tc = cand
                break
        if tc == 0:                                       # awkward bc: pad fallback
            tc = max(8, cap - cap % 8)
    # let v7x's second TensorCore share the work when it costs ~nothing
    if tc == bc and bc >= 16 and (bc // 2) % 8 == 0:
        tc = bc // 2
    return tc


# ---------------------------------------------------------------------------
# Wrapper
# ---------------------------------------------------------------------------
def detail_pooling(x, lam=0.6, alpha=0.1, asymmetric=False):
    """Pallas DetailPooling forward. x: (N, C, H, W) float32 -> (N, C, H//2, W//2)."""
    B, C, H, W = x.shape
    assert H % 2 == 0 and W % 2 == 0, "H and W must be even"
    BC, HW, HWo = B * C, H * W, (H // 2) * (W // 2)

    # flatten each channel plane into the lane axis (free reshape in HBM layout)
    xr = x.reshape(BC, HW).astype(jnp.float32)

    tc = _pick_tile(BC, HW, HWo)
    pad = (-BC) % tc
    if pad:  # rare fallback; zero rows are numerically harmless (t -> 1e-12)
        xr = jnp.concatenate([xr, jnp.zeros((pad, HW), jnp.float32)], axis=0)
    n_rows = BC + pad
    grid = (n_rows // tc,)

    blur_m, pair_m, down_m = _make_stencils(H, W)

    # forward pass uses |lambda|, |alpha| (the .pow_(2).pow_(0.5) in-place ops);
    # precompute 2*|lambda| so the kernel skips one full-plane multiply.
    params = jnp.array([2.0 * abs(lam), abs(alpha)], dtype=jnp.float32)

    kernel = functools.partial(_detail_pool_kernel, asymmetric=asymmetric)
    out = pl.pallas_call(
        kernel,
        out_shape=jax.ShapeDtypeStruct((n_rows, HWo), jnp.float32),
        grid=grid,
        in_specs=[
            pl.BlockSpec(memory_space=pltpu.MemorySpace.SMEM),   # [2|lambda|, |alpha|]
            pl.BlockSpec((tc, HW), lambda i: (i, 0)),            # tc planes / step
            pl.BlockSpec((HW, HW), lambda i: (0, 0)),            # blur stencil (resident)
            pl.BlockSpec((HW, HW), lambda i: (0, 0)),            # 2x2/1 pool stencil
            pl.BlockSpec((HW, HWo), lambda i: (0, 0)),           # 2x2/2 pool stencil
        ],
        out_specs=pl.BlockSpec((tc, HWo), lambda i: (i, 0)),     # lane-dense output
        compiler_params=pltpu.CompilerParams(
            dimension_semantics=("parallel",),        # independent blocks (megacore)
            vmem_limit_bytes=32 * 1024 * 1024,
        ),
    )(params, xr, blur_m, pair_m, down_m)
    return out[:BC].reshape(B, C, H // 2, W // 2)


# ---------------------------------------------------------------------------
# Pure-JAX reference mirroring the PyTorch forward (lite=True).
# ---------------------------------------------------------------------------
def detail_pooling_ref(x, lam=0.6, alpha=0.1, asymmetric=False):
    xp = jnp.pad(x, ((0, 0), (0, 0), (1, 1), (1, 1)), mode="edge")
    xh = xp[..., :, :-2] + 2.0 * xp[..., :, 1:-1] + xp[..., :, 2:]
    blur = (xh[..., :-2, :] + 2.0 * xh[..., 1:-1, :] + xh[..., 2:, :]) / 16.0
    eps = 1e-6
    d = x - blur
    if asymmetric:
        d = jnp.clip(d, 0.0, None)
    e56 = ((d * d + eps ** 2) ** 2) ** abs(lam)
    e4 = e56 + abs(alpha)
    e4p = jnp.pad(e4, ((0, 0), (0, 0), (0, 1), (0, 1)), mode="edge")
    denom = (e4p[..., :-1, :-1] + e4p[..., :-1, 1:]
             + e4p[..., 1:, :-1] + e4p[..., 1:, 1:]) / 4.0 + 1e-8
    e7 = e4 / denom
    p = x * e7
    B, C, H, W = x.shape
    return p.reshape(B, C, H // 2, 2, W // 2, 2).mean(axis=(3, 5))


if __name__ == "__main__":
    key = jax.random.PRNGKey(0)
    x = jax.random.normal(key, (2, 4, 16, 16), dtype=jnp.float32)

    for asym in (False, True):
        out = jax.block_until_ready(detail_pooling(x, lam=0.6, alpha=0.1, asymmetric=asym))
        assert out.shape == (2, 4, 8, 8), out.shape
        ref = detail_pooling_ref(x, lam=0.6, alpha=0.1, asymmetric=asym)
        if not jnp.allclose(out, ref, rtol=2e-3, atol=2e-4):
            err = float(jnp.max(jnp.abs(out - ref)))
            raise AssertionError(
                f"Pallas kernel output mismatch vs JAX reference "
                f"(asymmetric={asym}, max abs err={err:.3e})")

    print("KERNEL_OK")
</pallas_src>

<mosaic_0001>
module attributes {stable_mosaic.version = 11 : i64} {
  func.func @_detail_pool_kernel(%arg0: i32, %arg1: memref<2xf32, #tpu.memory_space<smem>>, %arg2: memref<8x256xf32, #tpu.memory_space<vmem>>, %arg3: memref<256x256xbf16, #tpu.memory_space<vmem>>, %arg4: memref<256x256xbf16, #tpu.memory_space<vmem>>, %arg5: memref<256x64xbf16, #tpu.memory_space<vmem>>, %arg6: memref<8x64xf32, #tpu.memory_space<vmem>>) attributes {dimension_semantics = [#tpu.dimension_semantics<parallel>], iteration_bounds = array<i64: 1>, scalar_prefetch = 0 : i64, scratch_operands = 0 : i64, tpu.core_type = #tpu.core_type<tc>, window_params = [{transform_indices = @transform_0, window_bounds = array<i64: 2>}, {transform_indices = @transform_1, window_bounds = array<i64: 8, 256>}, {pipeline_mode = #tpu.pipeline_mode<synchronous>, transform_indices = @transform_2, window_bounds = array<i64: 256, 256>}, {pipeline_mode = #tpu.pipeline_mode<synchronous>, transform_indices = @transform_3, window_bounds = array<i64: 256, 256>}, {pipeline_mode = #tpu.pipeline_mode<synchronous>, transform_indices = @transform_4, window_bounds = array<i64: 256, 64>}, {transform_indices = @transform_5, window_bounds = array<i64: 8, 64>}]} {
    %c0 = arith.constant 0 : index
    %c0_0 = arith.constant 0 : index
    %0 = vector.load %arg2[%c0, %c0_0] : memref<8x256xf32, #tpu.memory_space<vmem>>, vector<8x256xf32>
    %c0_1 = arith.constant 0 : index
    %1 = memref.load %arg1[%c0_1] : memref<2xf32, #tpu.memory_space<smem>>
    %c1 = arith.constant 1 : index
    %2 = memref.load %arg1[%c1] : memref<2xf32, #tpu.memory_space<smem>>
    %c0_2 = arith.constant 0 : index
    %c0_3 = arith.constant 0 : index
    %3 = vector.load %arg3[%c0_2, %c0_3] : memref<256x256xbf16, #tpu.memory_space<vmem>>, vector<256x256xbf16>
    %4 = arith.truncf %0 : vector<8x256xf32> to vector<8x256xbf16>
    %5 = arith.extf %4 : vector<8x256xbf16> to vector<8x256xf32>
    %6 = arith.subf %0, %5 : vector<8x256xf32>
    %cst = arith.constant dense<0.000000e+00> : vector<8x256xf32>
    %7 = tpu.matmul %4, %3, %cst {dimension_numbers = #tpu.dot_dimension_numbers<[1], [0], [0], [1], [0, 0, 1, 1], [], []>} : vector<8x256xbf16>, vector<256x256xbf16>, vector<8x256xf32> -> vector<8x256xf32>
    %8 = arith.truncf %6 : vector<8x256xf32> to vector<8x256xbf16>
    %9 = arith.extf %8 : vector<8x256xbf16> to vector<8x256xf32>
    %10 = arith.subf %6, %9 : vector<8x256xf32>
    %cst_4 = arith.constant dense<0.000000e+00> : vector<8x256xf32>
    %11 = tpu.matmul %8, %3, %cst_4 {dimension_numbers = #tpu.dot_dimension_numbers<[1], [0], [0], [1], [0, 0, 1, 1], [], []>} : vector<8x256xbf16>, vector<256x256xbf16>, vector<8x256xf32> -> vector<8x256xf32>
    %12 = arith.addf %7, %11 : vector<8x256xf32>
    %13 = arith.truncf %10 : vector<8x256xf32> to vector<8x256xbf16>
    %cst_5 = arith.constant dense<0.000000e+00> : vector<8x256xf32>
    %14 = tpu.matmul %13, %3, %cst_5 {dimension_numbers = #tpu.dot_dimension_numbers<[1], [0], [0], [1], [0, 0, 1, 1], [], []>} : vector<8x256xbf16>, vector<256x256xbf16>, vector<8x256xf32> -> vector<8x256xf32>
    %15 = arith.addf %12, %14 : vector<8x256xf32>
    %16 = arith.subf %0, %15 : vector<8x256xf32>
    %17 = arith.mulf %16, %16 : vector<8x256xf32>
    %cst_6 = arith.constant 9.99999996E-13 : f32
    %18 = vector.broadcast %cst_6 : f32 to vector<8x256xf32>
    %19 = arith.addf %17, %18 : vector<8x256xf32>
    %20 = math.log %19 : vector<8x256xf32>
    %21 = vector.broadcast %1 : f32 to vector<8x256xf32>
    %22 = arith.mulf %21, %20 : vector<8x256xf32>
    %23 = math.exp %22 : vector<8x256xf32>
    %24 = vector.broadcast %2 : f32 to vector<8x256xf32>
    %25 = arith.addf %23, %24 : vector<8x256xf32>
    %c0_7 = arith.constant 0 : index
    %c0_8 = arith.constant 0 : index
    %26 = vector.load %arg4[%c0_7, %c0_8] : memref<256x256xbf16, #tpu.memory_space<vmem>>, vector<256x256xbf16>
    %27 = arith.truncf %25 : vector<8x256xf32> to vector<8x256xbf16>
    %28 = arith.extf %27 : vector<8x256xbf16> to vector<8x256xf32>
    %29 = arith.subf %25, %28 : vector<8x256xf32>
    %cst_9 = arith.constant dense<0.000000e+00> : vector<8x256xf32>
    %30 = tpu.matmul %27, %26, %cst_9 {dimension_numbers = #tpu.dot_dimension_numbers<[1], [0], [0], [1], [0, 0, 1, 1], [], []>} : vector<8x256xbf16>, vector<256x256xbf16>, vector<8x256xf32> -> vector<8x256xf32>
    %31 = arith.truncf %29 : vector<8x256xf32> to vector<8x256xbf16>
    %32 = arith.extf %31 : vector<8x256xbf16> to vector<8x256xf32>
    %33 = arith.subf %29, %32 : vector<8x256xf32>
    %cst_10 = arith.constant dense<0.000000e+00> : vector<8x256xf32>
    %34 = tpu.matmul %31, %26, %cst_10 {dimension_numbers = #tpu.dot_dimension_numbers<[1], [0], [0], [1], [0, 0, 1, 1], [], []>} : vector<8x256xbf16>, vector<256x256xbf16>, vector<8x256xf32> -> vector<8x256xf32>
    %35 = arith.addf %30, %34 : vector<8x256xf32>
    %36 = arith.truncf %33 : vector<8x256xf32> to vector<8x256xbf16>
    %cst_11 = arith.constant dense<0.000000e+00> : vector<8x256xf32>
    %37 = tpu.matmul %36, %26, %cst_11 {dimension_numbers = #tpu.dot_dimension_numbers<[1], [0], [0], [1], [0, 0, 1, 1], [], []>} : vector<8x256xbf16>, vector<256x256xbf16>, vector<8x256xf32> -> vector<8x256xf32>
    %38 = arith.addf %35, %37 : vector<8x256xf32>
    %cst_12 = arith.constant 9.99999993E-9 : f32
    %39 = vector.broadcast %cst_12 : f32 to vector<8x256xf32>
    %40 = arith.addf %38, %39 : vector<8x256xf32>
    %41 = arith.divf %25, %40 : vector<8x256xf32>
    %42 = arith.mulf %0, %41 : vector<8x256xf32>
    %c0_13 = arith.constant 0 : index
    %c0_14 = arith.constant 0 : index
    %43 = vector.load %arg5[%c0_13, %c0_14] : memref<256x64xbf16, #tpu.memory_space<vmem>>, vector<256x64xbf16>
    %44 = arith.truncf %42 : vector<8x256xf32> to vector<8x256xbf16>
    %45 = arith.extf %44 : vector<8x256xbf16> to vector<8x256xf32>
    %46 = arith.subf %42, %45 : vector<8x256xf32>
    %cst_15 = arith.constant dense<0.000000e+00> : vector<8x64xf32>
    %47 = tpu.matmul %44, %43, %cst_15 {dimension_numbers = #tpu.dot_dimension_numbers<[1], [0], [0], [1], [0, 0, 1, 1], [], []>} : vector<8x256xbf16>, vector<256x64xbf16>, vector<8x64xf32> -> vector<8x64xf32>
    %48 = arith.truncf %46 : vector<8x256xf32> to vector<8x256xbf16>
    %49 = arith.extf %48 : vector<8x256xbf16> to vector<8x256xf32>
    %50 = arith.subf %46, %49 : vector<8x256xf32>
    %cst_16 = arith.constant dense<0.000000e+00> : vector<8x64xf32>
    %51 = tpu.matmul %48, %43, %cst_16 {dimension_numbers = #tpu.dot_dimension_numbers<[1], [0], [0], [1], [0, 0, 1, 1], [], []>} : vector<8x256xbf16>, vector<256x64xbf16>, vector<8x64xf32> -> vector<8x64xf32>
    %52 = arith.addf %47, %51 : vector<8x64xf32>
    %53 = arith.truncf %50 : vector<8x256xf32> to vector<8x256xbf16>
    %cst_17 = arith.constant dense<0.000000e+00> : vector<8x64xf32>
    %54 = tpu.matmul %53, %43, %cst_17 {dimension_numbers = #tpu.dot_dimension_numbers<[1], [0], [0], [1], [0, 0, 1, 1], [], []>} : vector<8x256xbf16>, vector<256x64xbf16>, vector<8x64xf32> -> vector<8x64xf32>
    %55 = arith.addf %52, %54 : vector<8x64xf32>
    %c0_18 = arith.constant 0 : index
    %c0_19 = arith.constant 0 : index
    %56 = vector.load %arg6[%c0_18, %c0_19] : memref<8x64xf32, #tpu.memory_space<vmem>>, vector<8x64xf32>
    tpu.vector_store %arg6[%c0_18, %c0_19], %55 {strides = array<i32>} : memref<8x64xf32, #tpu.memory_space<vmem>>, vector<8x64xf32>,
    return
  }
  func.func @transform_0(%arg0: i32) -> i32 {
    %c0_i32 = arith.constant 0 : i32
    %c0_i32_0 = arith.constant 0 : i32
    return %c0_i32 : i32
  }
  func.func @transform_1(%arg0: i32) -> (i32, i32) {
    %c0_i32 = arith.constant 0 : i32
    %c0_i32_0 = arith.constant 0 : i32
    return %arg0, %c0_i32 : i32, i32
  }
  func.func @transform_2(%arg0: i32) -> (i32, i32) {
    %c0_i32 = arith.constant 0 : i32
    %c0_i32_0 = arith.constant 0 : i32
    %c0_i32_1 = arith.constant 0 : i32
    return %c0_i32, %c0_i32_0 : i32, i32
  }
  func.func @transform_3(%arg0: i32) -> (i32, i32) {
    %c0_i32 = arith.constant 0 : i32
    %c0_i32_0 = arith.constant 0 : i32
    %c0_i32_1 = arith.constant 0 : i32
    return %c0_i32, %c0_i32_0 : i32, i32
  }
  func.func @transform_4(%arg0: i32) -> (i32, i32) {
    %c0_i32 = arith.constant 0 : i32
    %c0_i32_0 = arith.constant 0 : i32
    %c0_i32_1 = arith.constant 0 : i32
    return %c0_i32, %c0_i32_0 : i32, i32
  }
  func.func @transform_5(%arg0: i32) -> (i32, i32) {
    %c0_i32 = arith.constant 0 : i32
    %c0_i32_0 = arith.constant 0 : i32
    return %arg0, %c0_i32 : i32, i32
  }
}

</mosaic_0001>

<llo_original>
// kernel: tpu_custom_call.1
$region0: #{tpu_custom_call.1}
  #allocation0 [shape = 'u32[]', space=smem, size = 0x4, offset = 0x4, fixed_abs, tag = 'smem constant byte address 0x4 - core index']
  #allocation1 [shape = 'u32[144,128]{1,0:T(1,128)}', space=vmem, size = 0x12000, scoped, tag = 'internal scratch']
  %s0 = inlined_call_operand.vmem [shape: f32[2], index: 0, kind: input, shape index: {}]
  %s1 = inlined_call_operand.vmem [shape: f32[8,256], index: 1, kind: input, shape index: {}]
  %s2 = inlined_call_operand.hbm [shape: bf16[256,256], index: 2, kind: input, shape index: {}]
  %s3 = inlined_call_operand.hbm [shape: bf16[256,256], index: 3, kind: input, shape index: {}]
  %s4 = inlined_call_operand.vmem [shape: bf16[256,64], index: 4, kind: input, shape index: {}]
  %s5 = inlined_call_operand.hbm [shape: f32[8,64], index: 5, kind: output, shape index: {}]
  %s6 = sld [smem:[#allocation0]]
  $region42: #{tpu_custom_call.1} parent=0
    _
  %s8 = ssub.s32 1, %s6
  %s9 = scalar_select 0, %s8, %s6
  $region1: #{tpu_custom_call.1} parent=0
    #allocation2 [shape = 'u8[512]{0}', space=smem, size = 0x200, scoped, tag = 'input window, operand 0, single buffered']
    #allocation3 [shape = 's32[1]{0}', space=sflag, size = 0x4, scoped, tag = 'scoped memory for tpu_custom_call.1']
    #allocation4 [shape = 's32[1]{0}', space=sflag, size = 0x4, scoped, tag = 'scoped memory for tpu_custom_call.1']
    #allocation5 [shape = 's32[1]{0}', space=sflag, size = 0x4, scoped, tag = 'scoped memory for tpu_custom_call.1']
    #allocation6 [shape = 'u8[131072]{0}', space=vmem, size = 0x20000, scoped, tag = 'input window, operand 2, single buffered']
    #allocation7 [shape = 'u8[131072]{0}', space=vmem, size = 0x20000, scoped, tag = 'input window, operand 3, single buffered']
    #allocation8 [shape = 's32[1]{0}', space=sflag, size = 0x4, scoped, tag = 'scoped memory for tpu_custom_call.1']
    #allocation9 [shape = 'u8[4096]{0}', space=vmem, size = 0x1000, scoped, tag = 'output window, operand 0, single buffered']
    %10 = vsyncpa [#allocation5], 0
    %11 = vsyncpa [#allocation3], 0
    %12 = vsyncpa [#allocation8], 0
    %13 = vsyncpa [#allocation4], 0
    // Predicated region
    $region2: #{tpu_custom_call.1} parent=1 // pred_check
      _
    $region3: #{tpu_custom_call.1} parent=1 // pred_check_branch
      %15 = sbr.rel (0) target = $region5
    $region4: #{tpu_custom_call.1} parent=1 // pred_region
      %s17 = ssub.s32 16, 16
      %18 = vsyncadd [#allocation5], %s17
      %s20 = sshll.u32 %s0, 4
      %s21 = int_to_ptr.vmem [resolvable:$true] %s20
      %23 = dma.vmem_to_smem %s21, 16, [#allocation2], [#allocation5]
    $region5: #{tpu_custom_call.1} parent=1 // pred_fallthru
      _
    // Predicated region
    $region6: #{tpu_custom_call.1} parent=1 // pred_check
      _
    $region7: #{tpu_custom_call.1} parent=1 // pred_check_branch
      %25 = sbr.rel (0) target = $region9
    $region8: #{tpu_custom_call.1} parent=1 // pred_region
      _
    $region9: #{tpu_custom_call.1} parent=1 // pred_fallthru
      _
    // Predicated region
    $region10: #{tpu_custom_call.1} parent=1 // pred_check
      _
    $region11: #{tpu_custom_call.1} parent=1 // pred_check_branch
      %27 = sbr.rel (0) target = $region13
    $region12: #{tpu_custom_call.1} parent=1 // pred_region
      %s29 = ssub.s32 4096, 4096
      %30 = vsyncadd [#allocation3], %s29
      %s31 = sshll.u32 [#allocation6], 4
      %s32 = int_to_ptr.vmem [resolvable:$true] %s31
      %37 = dma.hbm_to_vmem [thread:$0]  %s2, 4096, %s32, [#allocation3], 128, 128, 8
    $region13: #{tpu_custom_call.1} parent=1 // pred_fallthru
      _
    // Predicated region
    $region14: #{tpu_custom_call.1} parent=1 // pred_check
      _
    $region15: #{tpu_custom_call.1} parent=1 // pred_check_branch
      %39 = sbr.rel (0) target = $region17
    $region16: #{tpu_custom_call.1} parent=1 // pred_region
      %s41 = ssub.s32 4096, 4096
      %42 = vsyncadd [#allocation8], %s41
      %s43 = sshll.u32 [#allocation7], 4
      %s44 = int_to_ptr.vmem [resolvable:$true] %s43
      %49 = dma.hbm_to_vmem [thread:$0]  %s3, 4096, %s44, [#allocation8], 128, 128, 8
    $region17: #{tpu_custom_call.1} parent=1 // pred_fallthru
      _
    // Predicated region
    $region18: #{tpu_custom_call.1} parent=1 // pred_check
      _
    $region19: #{tpu_custom_call.1} parent=1 // pred_check_branch
      %51 = sbr.rel (0) target = $region21
    $region20: #{tpu_custom_call.1} parent=1 // pred_region
      _
    $region21: #{tpu_custom_call.1} parent=1 // pred_fallthru
      _
    // Predicated region
    $region22: #{tpu_custom_call.1} parent=1 // pred_check
      _
    $region23: #{tpu_custom_call.1} parent=1 // pred_check_branch
      %53 = sbr.rel (0) target = $region25
    $region24: #{tpu_custom_call.1} parent=1 // pred_region
      %54 = dma.done [#allocation5], 16
    $region25: #{tpu_custom_call.1} parent=1 // pred_fallthru
      _
    // Predicated region
    $region26: #{tpu_custom_call.1} parent=1 // pred_check
      _
    $region27: #{tpu_custom_call.1} parent=1 // pred_check_branch
      %56 = sbr.rel (0) target = $region29
    $region28: #{tpu_custom_call.1} parent=1 // pred_region
      %57 = dma.done [#allocation3], 4096
    $region29: #{tpu_custom_call.1} parent=1 // pred_fallthru
      _
    // Predicated region
    $region30: #{tpu_custom_call.1} parent=1 // pred_check
      _
    $region31: #{tpu_custom_call.1} parent=1 // pred_check_branch
      %59 = sbr.rel (0) target = $region33
    $region32: #{tpu_custom_call.1} parent=1 // pred_region
      %60 = dma.done [#allocation8], 4096
    $region33: #{tpu_custom_call.1} parent=1 // pred_fallthru
      _
    %61 = sfence
    %v63 = vld [vmem:[%s1] sm:$0xff]
    %v64 = vld [vmem:[%s1 + $0x8] sm:$0xff]
    %s65 = sld [smem:[#allocation2]]
    %s66 = sld [smem:[#allocation2 + $0x1]]
    %v67 = vld [vmem:[#allocation6] sm:$0xff]
    %v68 = vld [vmem:[#allocation6 + $0x8] sm:$0xff]
    %v69 = vld [vmem:[#allocation6 + $0x10] sm:$0xff]
    %v70 = vld [vmem:[#allocation6 + $0x18] sm:$0xff]
    %v71 = vld [vmem:[#allocation6 + $0x20] sm:$0xff]
    %v72 = vld [vmem:[#allocation6 + $0x28] sm:$0xff]
    %v73 = vld [vmem:[#allocation6 + $0x30] sm:$0xff]
    %v74 = vld [vmem:[#allocation6 + $0x38] sm:$0xff]
    %v75 = vld [vmem:[#allocation6 + $0x40] sm:$0xff]
    %v76 = vld [vmem:[#allocation6 + $0x48] sm:$0xff]
    %v77 = vld [vmem:[#allocation6 + $0x50] sm:$0xff]
    %v78 = vld [vmem:[#allocation6 + $0x58] sm:$0xff]
    %v79 = vld [vmem:[#allocation6 + $0x60] sm:$0xff]
    %v80 = vld [vmem:[#allocation6 + $0x68] sm:$0xff]
    %v81 = vld [vmem:[#allocation6 + $0x70] sm:$0xff]
    %v82 = vld [vmem:[#allocation6 + $0x78] sm:$0xff]
    %v83 = vld [vmem:[#allocation6 + $0x80] sm:$0xff]
    %v84 = vld [vmem:[#allocation6 + $0x88] sm:$0xff]
    %v85 = vld [vmem:[#allocation6 + $0x90] sm:$0xff]
    %v86 = vld [vmem:[#allocation6 + $0x98] sm:$0xff]
    %v87 = vld [vmem:[#allocation6 + $0xa0] sm:$0xff]
    %v88 = vld [vmem:[#allocation6 + $0xa8] sm:$0xff]
    %v89 = vld [vmem:[#allocation6 + $0xb0] sm:$0xff]
    %v90 = vld [vmem:[#allocation6 + $0xb8] sm:$0xff]
    %v91 = vld [vmem:[#allocation6 + $0xc0] sm:$0xff]
    %v92 = vld [vmem:[#allocation6 + $0xc8] sm:$0xff]
    %v93 = vld [vmem:[#allocation6 + $0xd0] sm:$0xff]
    %v94 = vld [vmem:[#allocation6 + $0xd8] sm:$0xff]
    %v95 = vld [vmem:[#allocation6 + $0xe0] sm:$0xff]
    %v96 = vld [vmem:[#allocation6 + $0xe8] sm:$0xff]
    %v97 = vld [vmem:[#allocation6 + $0xf0] sm:$0xff]
    %v98 = vld [vmem:[#allocation6 + $0xf8] sm:$0xff]
    %v99 = vpack.c.bf16 %v63, %v63
    %v100 = vpack.c.bf16 %v64, %v64
    %v101 = vunpack.c.l.bf16 %v99
    %v102 = vunpack.c.l.bf16 %v100
    %v103 = vsub.f32 %v63, %v101
    %v104 = vsub.f32 %v64, %v102
    %v105 = vpack.c.bf16 %v103, %v103
    %v106 = vpack.c.bf16 %v104, %v104
    %v107 = vunpack.c.l.bf16 %v105
    %v108 = vunpack.c.l.bf16 %v106
    %v109 = vsub.f32 %v103, %v107
    %v110 = vsub.f32 %v104, %v108
    %v143 = vunpack.c.l.b16 %v67
    %v144 = vunpack.c.h.b16 %v67
    %v145 = vunpack.c.l.b16 %v68
    %v146 = vunpack.c.h.b16 %v68
    %v147 = vunpack.c.l.b16 %v69
    %v148 = vunpack.c.h.b16 %v69
    %v149 = vunpack.c.l.b16 %v70
    %v150 = vunpack.c.h.b16 %v70
    %v151 = vunpack.c.l.b16 %v71
    %v152 = vunpack.c.h.b16 %v71
    %v153 = vunpack.c.l.b16 %v72
    %v154 = vunpack.c.h.b16 %v72
    %v155 = vunpack.c.l.b16 %v73
    %v156 = vunpack.c.h.b16 %v73
    %v157 = vunpack.c.l.b16 %v74
    %v158 = vunpack.c.h.b16 %v74
    %v159 = vunpack.c.l.b16 %v75
    %v160 = vunpack.c.h.b16 %v75
    %v161 = vunpack.c.l.b16 %v76
    %v162 = vunpack.c.h.b16 %v76
    %v163 = vunpack.c.l.b16 %v77
    %v164 = vunpack.c.h.b16 %v77
    %v165 = vunpack.c.l.b16 %v78
    %v166 = vunpack.c.h.b16 %v78
    %v167 = vunpack.c.l.b16 %v79
    %v168 = vunpack.c.h.b16 %v79
    %v169 = vunpack.c.l.b16 %v80
    %v170 = vunpack.c.h.b16 %v80
    %v171 = vunpack.c.l.b16 %v81
    %v172 = vunpack.c.h.b16 %v81
    %v173 = vunpack.c.l.b16 %v82
    %v174 = vunpack.c.h.b16 %v82
    %v175 = vunpack.c.l.b16 %v83
    %v176 = vunpack.c.h.b16 %v83
    %v177 = vunpack.c.l.b16 %v84
    %v178 = vunpack.c.h.b16 %v84
    %v179 = vunpack.c.l.b16 %v85
    %v180 = vunpack.c.h.b16 %v85
    %v181 = vunpack.c.l.b16 %v86
    %v182 = vunpack.c.h.b16 %v86
    %v183 = vunpack.c.l.b16 %v87
    %v184 = vunpack.c.h.b16 %v87
    %v185 = vunpack.c.l.b16 %v88
    %v186 = vunpack.c.h.b16 %v88
    %v187 = vunpack.c.l.b16 %v89
    %v188 = vunpack.c.h.b16 %v89
    %v189 = vunpack.c.l.b16 %v90
    %v190 = vunpack.c.h.b16 %v90
    %v191 = vunpack.c.l.b16 %v91
    %v192 = vunpack.c.h.b16 %v91
    %v193 = vunpack.c.l.b16 %v92
    %v194 = vunpack.c.h.b16 %v92
    %v195 = vunpack.c.l.b16 %v93
    %v196 = vunpack.c.h.b16 %v93
    %v197 = vunpack.c.l.b16 %v94
    %v198 = vunpack.c.h.b16 %v94
    %v199 = vunpack.c.l.b16 %v95
    %v200 = vunpack.c.h.b16 %v95
    %v201 = vunpack.c.l.b16 %v96
    %v202 = vunpack.c.h.b16 %v96
    %v203 = vunpack.c.l.b16 %v97
    %v204 = vunpack.c.h.b16 %v97
    %v205 = vunpack.c.l.b16 %v98
    %v206 = vunpack.c.h.b16 %v98
    %v207 = vpack.c.b16 %v145, %v143
    %v208 = vpack.c.b16 %v146, %v144
    %v209 = vpack.c.b16 %v149, %v147
    %v210 = vpack.c.b16 %v150, %v148
    %v211 = vpack.c.b16 %v153, %v151
    %v212 = vpack.c.b16 %v154, %v152
    %v213 = vpack.c.b16 %v157, %v155
    %v214 = vpack.c.b16 %v158, %v156
    %v215 = vpack.c.b16 %v161, %v159
    %v216 = vpack.c.b16 %v162, %v160
    %v217 = vpack.c.b16 %v165, %v163
    %v218 = vpack.c.b16 %v166, %v164
    %v219 = vpack.c.b16 %v169, %v167
    %v220 = vpack.c.b16 %v170, %v168
    %v221 = vpack.c.b16 %v173, %v171
    %v222 = vpack.c.b16 %v174, %v172
    %v223 = vpack.c.b16 %v177, %v175
    %v224 = vpack.c.b16 %v178, %v176
    %v225 = vpack.c.b16 %v181, %v179
    %v226 = vpack.c.b16 %v182, %v180
    %v227 = vpack.c.b16 %v185, %v183
    %v228 = vpack.c.b16 %v186, %v184
    %v229 = vpack.c.b16 %v189, %v187
    %v230 = vpack.c.b16 %v190, %v188
    %v231 = vpack.c.b16 %v193, %v191
    %v232 = vpack.c.b16 %v194, %v192
    %v233 = vpack.c.b16 %v197, %v195
    %v234 = vpack.c.b16 %v198, %v196
    %v235 = vpack.c.b16 %v201, %v199
    %v236 = vpack.c.b16 %v202, %v200
    %v237 = vpack.c.b16 %v205, %v203
    %v238 = vpack.c.b16 %v206, %v204
    %271 = vmatprep.subr.bf16.mxu0 %v208
    %272 = vmatpush1.bf16.msra.mxu0 %v207
    %273 = vmatprep.subr.bf16.mxu0 %v210
    %274 = vmatpush1.bf16.msra.mxu0 %v209
    %275 = vmatprep.subr.bf16.mxu0 %v212
    %276 = vmatpush1.bf16.msra.mxu0 %v211
    %277 = vmatprep.subr.bf16.mxu0 %v214
    %278 = vmatpush1.bf16.msra.mxu0 %v213
    %279 = vmatprep.subr.bf16.mxu0 %v216
    %280 = vmatpush1.bf16.msra.mxu0 %v215
    %281 = vmatprep.subr.bf16.mxu0 %v218
    %282 = vmatpush1.bf16.msra.mxu0 %v217
    %283 = vmatprep.subr.bf16.mxu0 %v220
    %284 = vmatpush1.bf16.msra.mxu0 %v219
    %285 = vmatprep.subr.bf16.mxu0 %v222
    %286 = vmatpush1.bf16.msra.mxu0 %v221
    %287 = vmatprep.subr.bf16.mxu0 %v224
    %288 = vmatpush1.bf16.msra.mxu0 %v223
    %289 = vmatprep.subr.bf16.mxu0 %v226
    %290 = vmatpush1.bf16.msra.mxu0 %v225
    %291 = vmatprep.subr.bf16.mxu0 %v228
    %292 = vmatpush1.bf16.msra.mxu0 %v227
    %293 = vmatprep.subr.bf16.mxu0 %v230
    %294 = vmatpush1.bf16.msra.mxu0 %v229
    %295 = vmatprep.subr.bf16.mxu0 %v232
    %296 = vmatpush1.bf16.msra.mxu0 %v231
    %297 = vmatprep.subr.bf16.mxu0 %v234
    %298 = vmatpush1.bf16.msra.mxu0 %v233
    %299 = vmatprep.subr.bf16.mxu0 %v236
    %300 = vmatpush1.bf16.msra.mxu0 %v235
    %301 = vmatprep.subr.bf16.mxu0 %v238
    %302 = vmatpush1.bf16.msra.mxu0 %v237
    %303 = vmatprep.mubr.bf16.mxu0 %v106
    %304 = vmatmul.mubr.bf16.gmra.mrb[0].mxu0 %v105
    %v305 = vpop.f32.mrb[0].mxu0
    %v306 = vadd.f32 0.0, %v305
    %v307 = vpop.f32.mrb[0].mxu0
    %v308 = vadd.f32 0.0, %v307
    %v309 = vpop.f32.mrb[0].mxu0
    %v310 = vpop.f32.mrb[0].mxu0
    %311 = vdwg.mxu0
    %312 = vmatprep.subr.bf16.mxu0 %v208
    %313 = vmatpush1.bf16.msra.mxu0 %v207
    %314 = vmatprep.subr.bf16.mxu0 %v210
    %315 = vmatpush1.bf16.msra.mxu0 %v209
    %316 = vmatprep.subr.bf16.mxu0 %v212
    %317 = vmatpush1.bf16.msra.mxu0 %v211
    %318 = vmatprep.subr.bf16.mxu0 %v214
    %319 = vmatpush1.bf16.msra.mxu0 %v213
    %320 = vmatprep.subr.bf16.mxu0 %v216
    %321 = vmatpush1.bf16.msra.mxu0 %v215
    %322 = vmatprep.subr.bf16.mxu0 %v218
    %323 = vmatpush1.bf16.msra.mxu0 %v217
    %324 = vmatprep.subr.bf16.mxu0 %v220
    %325 = vmatpush1.bf16.msra.mxu0 %v219
    %326 = vmatprep.subr.bf16.mxu0 %v222
    %327 = vmatpush1.bf16.msra.mxu0 %v221
    %328 = vmatprep.subr.bf16.mxu0 %v224
    %329 = vmatpush1.bf16.msra.mxu0 %v223
    %330 = vmatprep.subr.bf16.mxu0 %v226
    %331 = vmatpush1.bf16.msra.mxu0 %v225
    %332 = vmatprep.subr.bf16.mxu0 %v228
    %333 = vmatpush1.bf16.msra.mxu0 %v227
    %334 = vmatprep.subr.bf16.mxu0 %v230
    %335 = vmatpush1.bf16.msra.mxu0 %v229
    %336 = vmatprep.subr.bf16.mxu0 %v232
    %337 = vmatpush1.bf16.msra.mxu0 %v231
    %338 = vmatprep.subr.bf16.mxu0 %v234
    %339 = vmatpush1.bf16.msra.mxu0 %v233
    %340 = vmatprep.subr.bf16.mxu0 %v236
    %341 = vmatpush1.bf16.msra.mxu0 %v235
    %342 = vmatprep.subr.bf16.mxu0 %v238
    %343 = vmatpush1.bf16.msra.mxu0 %v237
    %344 = vmatprep.mubr.bf16.mxu0 %v100
    %345 = vmatmul.mubr.bf16.gmra.mrb[0].mxu0 %v99
    %v346 = vpop.f32.mrb[0].mxu0
    %v347 = vadd.f32 %v306, %v346
    %v348 = vpop.f32.mrb[0].mxu0
    %v349 = vadd.f32 %v308, %v348
    %v350 = vpop.f32.mrb[0].mxu0
    %v351 = vpop.f32.mrb[0].mxu0
    %352 = vdwg.mxu0
    %v353 = vpack.c.bf16 %v109, %v109
    %v354 = vpack.c.bf16 %v110, %v110
    %355 = vmatprep.subr.bf16.mxu0 %v208
    %356 = vmatpush1.bf16.msra.mxu0 %v207
    %357 = vmatprep.subr.bf16.mxu0 %v210
    %358 = vmatpush1.bf16.msra.mxu0 %v209
    %359 = vmatprep.subr.bf16.mxu0 %v212
    %360 = vmatpush1.bf16.msra.mxu0 %v211
    %361 = vmatprep.subr.bf16.mxu0 %v214
    %362 = vmatpush1.bf16.msra.mxu0 %v213
    %363 = vmatprep.subr.bf16.mxu0 %v216
    %364 = vmatpush1.bf16.msra.mxu0 %v215
    %365 = vmatprep.subr.bf16.mxu0 %v218
    %366 = vmatpush1.bf16.msra.mxu0 %v217
    %367 = vmatprep.subr.bf16.mxu0 %v220
    %368 = vmatpush1.bf16.msra.mxu0 %v219
    %369 = vmatprep.subr.bf16.mxu0 %v222
    %370 = vmatpush1.bf16.msra.mxu0 %v221
    %371 = vmatprep.subr.bf16.mxu0 %v224
    %372 = vmatpush1.bf16.msra.mxu0 %v223
    %373 = vmatprep.subr.bf16.mxu0 %v226
    %374 = vmatpush1.bf16.msra.mxu0 %v225
    %375 = vmatprep.subr.bf16.mxu0 %v228
    %376 = vmatpush1.bf16.msra.mxu0 %v227
    %377 = vmatprep.subr.bf16.mxu0 %v230
    %378 = vmatpush1.bf16.msra.mxu0 %v229
    %379 = vmatprep.subr.bf16.mxu0 %v232
    %380 = vmatpush1.bf16.msra.mxu0 %v231
    %381 = vmatprep.subr.bf16.mxu0 %v234
    %382 = vmatpush1.bf16.msra.mxu0 %v233
    %383 = vmatprep.subr.bf16.mxu0 %v236
    %384 = vmatpush1.bf16.msra.mxu0 %v235
    %385 = vmatprep.subr.bf16.mxu0 %v238
    %386 = vmatpush1.bf16.msra.mxu0 %v237
    %387 = vmatprep.mubr.bf16.mxu0 %v354
    %388 = vmatmul.mubr.bf16.gmra.mrb[0].mxu0 %v353
    %v389 = vpop.f32.mrb[0].mxu0
    %v390 = vadd.f32 0.0, %v389
    %v391 = vpop.f32.mrb[0].mxu0
    %v392 = vadd.f32 0.0, %v391
    %v393 = vpop.f32.mrb[0].mxu0
    %v394 = vpop.f32.mrb[0].mxu0
    %395 = vdwg.mxu0
    %v396 = vadd.f32 %v347, %v390
    %v397 = vadd.f32 %v349, %v392
    %v398 = vsub.f32 %v63, %v396
    %v399 = vsub.f32 %v64, %v397
    %v400 = vmul.f32 %v398, %v398
    %v401 = vmul.f32 %v399, %v399
    %v402 = vadd.f32 %v400, 1e-12
    %v403 = vadd.f32 %v401, 1e-12
    %v404 = vlog2.pop %v402
    %v405 = vmul.f32 %v404, 0.6931472
    %v406 = vlog2.pop %v403
    %v407 = vmul.f32 %v406, 0.6931472
    %v408 = vstv %s65
    %v409 = vmul.f32 %v408, %v405
    %v410 = vmul.f32 %v408, %v407
    %v411 = vmul.f32 %v409, 1.442695
    %v412 = vpow.pop %v411
    %v413 = vmul.f32 %v410, 1.442695
    %v414 = vpow.pop %v413
    %v415 = vstv %s66
    %v416 = vadd.f32 %v412, %v415
    %v417 = vadd.f32 %v414, %v415
    %v418 = vld [vmem:[#allocation7] sm:$0xff]
    %v419 = vld [vmem:[#allocation7 + $0x8] sm:$0xff]
    %v420 = vld [vmem:[#allocation7 + $0x10] sm:$0xff]
    %v421 = vld [vmem:[#allocation7 + $0x18] sm:$0xff]
    %v422 = vld [vmem:[#allocation7 + $0x20] sm:$0xff]
    %v423 = vld [vmem:[#allocation7 + $0x28] sm:$0xff]
    %v424 = vld [vmem:[#allocation7 + $0x30] sm:$0xff]
    %v425 = vld [vmem:[#allocation7 + $0x38] sm:$0xff]
    %v426 = vld [vmem:[#allocation7 + $0x40] sm:$0xff]
    %v427 = vld [vmem:[#allocation7 + $0x48] sm:$0xff]
    %v428 = vld [vmem:[#allocation7 + $0x50] sm:$0xff]
    %v429 = vld [vmem:[#allocation7 + $0x58] sm:$0xff]
    %v430 = vld [vmem:[#allocation7 + $0x60] sm:$0xff]
    %v431 = vld [vmem:[#allocation7 + $0x68] sm:$0xff]
    %v432 = vld [vmem:[#allocation7 + $0x70] sm:$0xff]
    %v433 = vld [vmem:[#allocation7 + $0x78] sm:$0xff]
    %v434 = vld [vmem:[#allocation7 + $0x80] sm:$0xff]
    %v435 = vld [vmem:[#allocation7 + $0x88] sm:$0xff]
    %v436 = vld [vmem:[#allocation7 + $0x90] sm:$0xff]
    %v437 = vld [vmem:[#allocation7 + $0x98] sm:$0xff]
    %v438 = vld [vmem:[#allocation7 + $0xa0] sm:$0xff]
    %v439 = vld [vmem:[#allocation7 + $0xa8] sm:$0xff]
    %v440 = vld [vmem:[#allocation7 + $0xb0] sm:$0xff]
    %v441 = vld [vmem:[#allocation7 + $0xb8] sm:$0xff]
    %v442 = vld [vmem:[#allocation7 + $0xc0] sm:$0xff]
    %v443 = vld [vmem:[#allocation7 + $0xc8] sm:$0xff]
    %v444 = vld [vmem:[#allocation7 + $0xd0] sm:$0xff]
    %v445 = vld [vmem:[#allocation7 + $0xd8] sm:$0xff]
    %v446 = vld [vmem:[#allocation7 + $0xe0] sm:$0xff]
    %v447 = vld [vmem:[#allocation7 + $0xe8] sm:$0xff]
    %v448 = vld [vmem:[#allocation7 + $0xf0] sm:$0xff]
    %v449 = vld [vmem:[#allocation7 + $0xf8] sm:$0xff]
    %v450 = vpack.c.bf16 %v416, %v416
    %v451 = vpack.c.bf16 %v417, %v417
    %v452 = vunpack.c.l.bf16 %v450
    %v453 = vunpack.c.l.bf16 %v451
    %v454 = vsub.f32 %v416, %v452
    %v455 = vsub.f32 %v417, %v453
    %v456 = vpack.c.bf16 %v454, %v454
    %v457 = vpack.c.bf16 %v455, %v455
    %v458 = vunpack.c.l.bf16 %v456
    %v459 = vunpack.c.l.bf16 %v457
    %v460 = vsub.f32 %v454, %v458
    %v461 = vsub.f32 %v455, %v459
    %v494 = vunpack.c.l.b16 %v418
    %v495 = vunpack.c.h.b16 %v418
    %v496 = vunpack.c.l.b16 %v419
    %v497 = vunpack.c.h.b16 %v419
    %v498 = vunpack.c.l.b16 %v420
    %v499 = vunpack.c.h.b16 %v420
    %v500 = vunpack.c.l.b16 %v421
    %v501 = vunpack.c.h.b16 %v421
    %v502 = vunpack.c.l.b16 %v422
    %v503 = vunpack.c.h.b16 %v422
    %v504 = vunpack.c.l.b16 %v423
    %v505 = vunpack.c.h.b16 %v423
    %v506 = vunpack.c.l.b16 %v424
    %v507 = vunpack.c.h.b16 %v424
    %v508 = vunpack.c.l.b16 %v425
    %v509 = vunpack.c.h.b16 %v425
    %v510 = vunpack.c.l.b16 %v426
    %v511 = vunpack.c.h.b16 %v426
    %v512 = vunpack.c.l.b16 %v427
    %v513 = vunpack.c.h.b16 %v427
    %v514 = vunpack.c.l.b16 %v428
    %v515 = vunpack.c.h.b16 %v428
    %v516 = vunpack.c.l.b16 %v429
    %v517 = vunpack.c.h.b16 %v429
    %v518 = vunpack.c.l.b16 %v430
    %v519 = vunpack.c.h.b16 %v430
    %v520 = vunpack.c.l.b16 %v431
    %v521 = vunpack.c.h.b16 %v431
    %v522 = vunpack.c.l.b16 %v432
    %v523 = vunpack.c.h.b16 %v432
    %v524 = vunpack.c.l.b16 %v433
    %v525 = vunpack.c.h.b16 %v433
    %v526 = vunpack.c.l.b16 %v434
    %v527 = vunpack.c.h.b16 %v434
    %v528 = vunpack.c.l.b16 %v435
    %v529 = vunpack.c.h.b16 %v435
    %v530 = vunpack.c.l.b16 %v436
    %v531 = vunpack.c.h.b16 %v436
    %v532 = vunpack.c.l.b16 %v437
    %v533 = vunpack.c.h.b16 %v437
    %v534 = vunpack.c.l.b16 %v438
    %v535 = vunpack.c.h.b16 %v438
    %v536 = vunpack.c.l.b16 %v439
    %v537 = vunpack.c.h.b16 %v439
    %v538 = vunpack.c.l.b16 %v440
    %v539 = vunpack.c.h.b16 %v440
    %v540 = vunpack.c.l.b16 %v441
    %v541 = vunpack.c.h.b16 %v441
    %v542 = vunpack.c.l.b16 %v442
    %v543 = vunpack.c.h.b16 %v442
    %v544 = vunpack.c.l.b16 %v443
    %v545 = vunpack.c.h.b16 %v443
    %v546 = vunpack.c.l.b16 %v444
    %v547 = vunpack.c.h.b16 %v444
    %v548 = vunpack.c.l.b16 %v445
    %v549 = vunpack.c.h.b16 %v445
    %v550 = vunpack.c.l.b16 %v446
    %v551 = vunpack.c.h.b16 %v446
    %v552 = vunpack.c.l.b16 %v447
    %v553 = vunpack.c.h.b16 %v447
    %v554 = vunpack.c.l.b16 %v448
    %v555 = vunpack.c.h.b16 %v448
    %v556 = vunpack.c.l.b16 %v449
    %v557 = vunpack.c.h.b16 %v449
    %v558 = vpack.c.b16 %v496, %v494
    %v559 = vpack.c.b16 %v497, %v495
    %v560 = vpack.c.b16 %v500, %v498
    %v561 = vpack.c.b16 %v501, %v499
    %v562 = vpack.c.b16 %v504, %v502
    %v563 = vpack.c.b16 %v505, %v503
    %v564 = vpack.c.b16 %v508, %v506
    %v565 = vpack.c.b16 %v509, %v507
    %v566 = vpack.c.b16 %v512, %v510
    %v567 = vpack.c.b16 %v513, %v511
    %v568 = vpack.c.b16 %v516, %v514
    %v569 = vpack.c.b16 %v517, %v515
    %v570 = vpack.c.b16 %v520, %v518
    %v571 = vpack.c.b16 %v521, %v519
    %v572 = vpack.c.b16 %v524, %v522
    %v573 = vpack.c.b16 %v525, %v523
    %v574 = vpack.c.b16 %v528, %v526
    %v575 = vpack.c.b16 %v529, %v527
    %v576 = vpack.c.b16 %v532, %v530
    %v577 = vpack.c.b16 %v533, %v531
    %v578 = vpack.c.b16 %v536, %v534
    %v579 = vpack.c.b16 %v537, %v535
    %v580 = vpack.c.b16 %v540, %v538
    %v581 = vpack.c.b16 %v541, %v539
    %v582 = vpack.c.b16 %v544, %v542
    %v583 = vpack.c.b16 %v545, %v543
    %v584 = vpack.c.b16 %v548, %v546
    %v585 = vpack.c.b16 %v549, %v547
    %v586 = vpack.c.b16 %v552, %v550
    %v587 = vpack.c.b16 %v553, %v551
    %v588 = vpack.c.b16 %v556, %v554
    %v589 = vpack.c.b16 %v557, %v555
    %622 = vmatprep.subr.bf16.mxu0 %v559
    %623 = vmatpush1.bf16.msra.mxu0 %v558
    %624 = vmatprep.subr.bf16.mxu0 %v561
    %625 = vmatpush1.bf16.msra.mxu0 %v560
    %626 = vmatprep.subr.bf16.mxu0 %v563
    %627 = vmatpush1.bf16.msra.mxu0 %v562
    %628 = vmatprep.subr.bf16.mxu0 %v565
    %629 = vmatpush1.bf16.msra.mxu0 %v564
    %630 = vmatprep.subr.bf16.mxu0 %v567
    %631 = vmatpush1.bf16.msra.mxu0 %v566
    %632 = vmatprep.subr.bf16.mxu0 %v569
    %633 = vmatpush1.bf16.msra.mxu0 %v568
    %634 = vmatprep.subr.bf16.mxu0 %v571
    %635 = vmatpush1.bf16.msra.mxu0 %v570
    %636 = vmatprep.subr.bf16.mxu0 %v573
    %637 = vmatpush1.bf16.msra.mxu0 %v572
    %638 = vmatprep.subr.bf16.mxu0 %v575
    %639 = vmatpush1.bf16.msra.mxu0 %v574
    %640 = vmatprep.subr.bf16.mxu0 %v577
    %641 = vmatpush1.bf16.msra.mxu0 %v576
    %642 = vmatprep.subr.bf16.mxu0 %v579
    %643 = vmatpush1.bf16.msra.mxu0 %v578
    %644 = vmatprep.subr.bf16.mxu0 %v581
    %645 = vmatpush1.bf16.msra.mxu0 %v580
    %646 = vmatprep.subr.bf16.mxu0 %v583
    %647 = vmatpush1.bf16.msra.mxu0 %v582
    %648 = vmatprep.subr.bf16.mxu0 %v585
    %649 = vmatpush1.bf16.msra.mxu0 %v584
    %650 = vmatprep.subr.bf16.mxu0 %v587
    %651 = vmatpush1.bf16.msra.mxu0 %v586
    %652 = vmatprep.subr.bf16.mxu0 %v589
    %653 = vmatpush1.bf16.msra.mxu0 %v588
    %654 = vmatprep.mubr.bf16.mxu0 %v457
    %655 = vmatmul.mubr.bf16.gmra.mrb[0].mxu0 %v456
    %v656 = vpop.f32.mrb[0].mxu0
    %v657 = vadd.f32 0.0, %v656
    %v658 = vpop.f32.mrb[0].mxu0
    %v659 = vadd.f32 0.0, %v658
    %v660 = vpop.f32.mrb[0].mxu0
    %v661 = vpop.f32.mrb[0].mxu0
    %662 = vdwg.mxu0
    %663 = vmatprep.subr.bf16.mxu0 %v559
    %664 = vmatpush1.bf16.msra.mxu0 %v558
    %665 = vmatprep.subr.bf16.mxu0 %v561
    %666 = vmatpush1.bf16.msra.mxu0 %v560
    %667 = vmatprep.subr.bf16.mxu0 %v563
    %668 = vmatpush1.bf16.msra.mxu0 %v562
    %669 = vmatprep.subr.bf16.mxu0 %v565
    %670 = vmatpush1.bf16.msra.mxu0 %v564
    %671 = vmatprep.subr.bf16.mxu0 %v567
    %672 = vmatpush1.bf16.msra.mxu0 %v566
    %673 = vmatprep.subr.bf16.mxu0 %v569
    %674 = vmatpush1.bf16.msra.mxu0 %v568
    %675 = vmatprep.subr.bf16.mxu0 %v571
    %676 = vmatpush1.bf16.msra.mxu0 %v570
    %677 = vmatprep.subr.bf16.mxu0 %v573
    %678 = vmatpush1.bf16.msra.mxu0 %v572
    %679 = vmatprep.subr.bf16.mxu0 %v575
    %680 = vmatpush1.bf16.msra.mxu0 %v574
    %681 = vmatprep.subr.bf16.mxu0 %v577
    %682 = vmatpush1.bf16.msra.mxu0 %v576
    %683 = vmatprep.subr.bf16.mxu0 %v579
    %684 = vmatpush1.bf16.msra.mxu0 %v578
    %685 = vmatprep.subr.bf16.mxu0 %v581
    %686 = vmatpush1.bf16.msra.mxu0 %v580
    %687 = vmatprep.subr.bf16.mxu0 %v583
    %688 = vmatpush1.bf16.msra.mxu0 %v582
    %689 = vmatprep.subr.bf16.mxu0 %v585
    %690 = vmatpush1.bf16.msra.mxu0 %v584
    %691 = vmatprep.subr.bf16.mxu0 %v587
    %692 = vmatpush1.bf16.msra.mxu0 %v586
    %693 = vmatprep.subr.bf16.mxu0 %v589
    %694 = vmatpush1.bf16.msra.mxu0 %v588
    %695 = vmatprep.mubr.bf16.mxu0 %v451
    %696 = vmatmul.mubr.bf16.gmra.mrb[0].mxu0 %v450
    %v697 = vpop.f32.mrb[0].mxu0
    %v698 = vadd.f32 %v657, %v697
    %v699 = vpop.f32.mrb[0].mxu0
    %v700 = vadd.f32 %v659, %v699
    %v701 = vpop.f32.mrb[0].mxu0
    %v702 = vpop.f32.mrb[0].mxu0
    %703 = vdwg.mxu0
    %v704 = vpack.c.bf16 %v460, %v460
    %v705 = vpack.c.bf16 %v461, %v461
    %706 = vmatprep.subr.bf16.mxu0 %v559
    %707 = vmatpush1.bf16.msra.mxu0 %v558
    %708 = vmatprep.subr.bf16.mxu0 %v561
    %709 = vmatpush1.bf16.msra.mxu0 %v560
    %710 = vmatprep.subr.bf16.mxu0 %v563
    %711 = vmatpush1.bf16.msra.mxu0 %v562
    %712 = vmatprep.subr.bf16.mxu0 %v565
    %713 = vmatpush1.bf16.msra.mxu0 %v564
    %714 = vmatprep.subr.bf16.mxu0 %v567
    %715 = vmatpush1.bf16.msra.mxu0 %v566
    %716 = vmatprep.subr.bf16.mxu0 %v569
    %717 = vmatpush1.bf16.msra.mxu0 %v568
    %718 = vmatprep.subr.bf16.mxu0 %v571
    %719 = vmatpush1.bf16.msra.mxu0 %v570
    %720 = vmatprep.subr.bf16.mxu0 %v573
    %721 = vmatpush1.bf16.msra.mxu0 %v572
    %722 = vmatprep.subr.bf16.mxu0 %v575
    %723 = vmatpush1.bf16.msra.mxu0 %v574
    %724 = vmatprep.subr.bf16.mxu0 %v577
    %725 = vmatpush1.bf16.msra.mxu0 %v576
    %726 = vmatprep.subr.bf16.mxu0 %v579
    %727 = vmatpush1.bf16.msra.mxu0 %v578
    %728 = vmatprep.subr.bf16.mxu0 %v581
    %729 = vmatpush1.bf16.msra.mxu0 %v580
    %730 = vmatprep.subr.bf16.mxu0 %v583
    %731 = vmatpush1.bf16.msra.mxu0 %v582
    %732 = vmatprep.subr.bf16.mxu0 %v585
    %733 = vmatpush1.bf16.msra.mxu0 %v584
    %734 = vmatprep.subr.bf16.mxu0 %v587
    %735 = vmatpush1.bf16.msra.mxu0 %v586
    %736 = vmatprep.subr.bf16.mxu0 %v589
    %737 = vmatpush1.bf16.msra.mxu0 %v588
    %738 = vmatprep.mubr.bf16.mxu0 %v705
    %739 = vmatmul.mubr.bf16.gmra.mrb[0].mxu0 %v704
    %v740 = vpop.f32.mrb[0].mxu0
    %v741 = vadd.f32 0.0, %v740
    %v742 = vpop.f32.mrb[0].mxu0
    %v743 = vadd.f32 0.0, %v742
    %v744 = vpop.f32.mrb[0].mxu0
    %v745 = vpop.f32.mrb[0].mxu0
    %746 = vdwg.mxu0
    %v747 = vadd.f32 %v698, %v741
    %v748 = vadd.f32 %v700, %v743
    %v749 = vadd.f32 %v747, 1e-08
    %v750 = vadd.f32 %v748, 1e-08
    %v751 = vrcp.pop %v749
    %v752 = vmul.f32 %v416, %v751
    %v753 = vrcp.pop %v750
    %v754 = vmul.f32 %v417, %v753
    %v755 = vmul.f32 %v63, %v752
    %v756 = vmul.f32 %v64, %v754
    %v757 = vld [vmem:[%s4] sm:$0xf]
    %v758 = vld [vmem:[%s4 + $0x4] sm:$0xf]
    %v759 = vld [vmem:[%s4 + $0x8] sm:$0xf]
    %v760 = vld [vmem:[%s4 + $0xc] sm:$0xf]
    %v761 = vld [vmem:[%s4 + $0x10] sm:$0xf]
    %v762 = vld [vmem:[%s4 + $0x14] sm:$0xf]
    %v763 = vld [vmem:[%s4 + $0x18] sm:$0xf]
    %v764 = vld [vmem:[%s4 + $0x1c] sm:$0xf]
    %v765 = vld [vmem:[%s4 + $0x20] sm:$0xf]
    %v766 = vld [vmem:[%s4 + $0x24] sm:$0xf]
    %v767 = vld [vmem:[%s4 + $0x28] sm:$0xf]
    %v768 = vld [vmem:[%s4 + $0x2c] sm:$0xf]
    %v769 = vld [vmem:[%s4 + $0x30] sm:$0xf]
    %v770 = vld [vmem:[%s4 + $0x34] sm:$0xf]
    %v771 = vld [vmem:[%s4 + $0x38] sm:$0xf]
    %v772 = vld [vmem:[%s4 + $0x3c] sm:$0xf]
    %v773 = vld [vmem:[%s4 + $0x40] sm:$0xf]
    %v774 = vld [vmem:[%s4 + $0x44] sm:$0xf]
    %v775 = vld [vmem:[%s4 + $0x48] sm:$0xf]
    %v776 = vld [vmem:[%s4 + $0x4c] sm:$0xf]
    %v777 = vld [vmem:[%s4 + $0x50] sm:$0xf]
    %v778 = vld [vmem:[%s4 + $0x54] sm:$0xf]
    %v779 = vld [vmem:[%s4 + $0x58] sm:$0xf]
    %v780 = vld [vmem:[%s4 + $0x5c] sm:$0xf]
    %v781 = vld [vmem:[%s4 + $0x60] sm:$0xf]
    %v782 = vld [vmem:[%s4 + $0x64] sm:$0xf]
    %v783 = vld [vmem:[%s4 + $0x68] sm:$0xf]
    %v784 = vld [vmem:[%s4 + $0x6c] sm:$0xf]
    %v785 = vld [vmem:[%s4 + $0x70] sm:$0xf]
    %v786 = vld [vmem:[%s4 + $0x74] sm:$0xf]
    %v787 = vld [vmem:[%s4 + $0x78] sm:$0xf]
    %v788 = vld [vmem:[%s4 + $0x7c] sm:$0xf]
    %v789 = vpack.c.bf16 %v755, %v755
    %v790 = vpack.c.bf16 %v756, %v756
    %v791 = vunpack.c.l.bf16 %v789
    %v792 = vunpack.c.l.bf16 %v790
    %v793 = vsub.f32 %v755, %v791
    %v794 = vsub.f32 %v756, %v792
    %v795 = vpack.c.bf16 %v793, %v793
    %v796 = vpack.c.bf16 %v794, %v794
    %v797 = vunpack.c.l.bf16 %v795
    %v798 = vunpack.c.l.bf16 %v796
    %v799 = vsub.f32 %v793, %v797
    %v800 = vsub.f32 %v794, %v798
    %v833 = vunpack.c.l.b16 %v757
    %v834 = vunpack.c.l.b16 %v758
    %v835 = vunpack.c.l.b16 %v759
    %v836 = vunpack.c.l.b16 %v760
    %v837 = vunpack.c.l.b16 %v761
    %v838 = vunpack.c.l.b16 %v762
    %v839 = vunpack.c.l.b16 %v763
    %v840 = vunpack.c.l.b16 %v764
    %v841 = vunpack.c.l.b16 %v765
    %v842 = vunpack.c.l.b16 %v766
    %v843 = vunpack.c.l.b16 %v767
    %v844 = vunpack.c.l.b16 %v768
    %v845 = vunpack.c.l.b16 %v769
    %v846 = vunpack.c.l.b16 %v770
    %v847 = vunpack.c.l.b16 %v771
    %v848 = vunpack.c.l.b16 %v772
    %v849 = vunpack.c.l.b16 %v773
    %v850 = vunpack.c.l.b16 %v774
    %v851 = vunpack.c.l.b16 %v775
    %v852 = vunpack.c.l.b16 %v776
    %v853 = vunpack.c.l.b16 %v777
    %v854 = vunpack.c.l.b16 %v778
    %v855 = vunpack.c.l.b16 %v779
    %v856 = vunpack.c.l.b16 %v780
    %v857 = vunpack.c.l.b16 %v781
    %v858 = vunpack.c.l.b16 %v782
    %v859 = vunpack.c.l.b16 %v783
    %v860 = vunpack.c.l.b16 %v784
    %v861 = vunpack.c.l.b16 %v785
    %v862 = vunpack.c.l.b16 %v786
    %v863 = vunpack.c.l.b16 %v787
    %v864 = vunpack.c.l.b16 %v788
    %v865 = vpack.c.b16 %v834, %v833
    %v866 = vpack.c.b16 %v836, %v835
    %v867 = vpack.c.b16 %v838, %v837
    %v868 = vpack.c.b16 %v840, %v839
    %v869 = vpack.c.b16 %v842, %v841
    %v870 = vpack.c.b16 %v844, %v843
    %v871 = vpack.c.b16 %v846, %v845
    %v872 = vpack.c.b16 %v848, %v847
    %v873 = vpack.c.b16 %v850, %v849
    %v874 = vpack.c.b16 %v852, %v851
    %v875 = vpack.c.b16 %v854, %v853
    %v876 = vpack.c.b16 %v856, %v855
    %v877 = vpack.c.b16 %v858, %v857
    %v878 = vpack.c.b16 %v860, %v859
    %v879 = vpack.c.b16 %v862, %v861
    %v880 = vpack.c.b16 %v864, %v863
    %897 = vmatprep.subr.bf16.mxu0 0
    %898 = vmatpush1.bf16.msra.mxu0 %v865
    %899 = vmatprep.subr.bf16.mxu0 0
    %900 = vmatpush1.bf16.msra.mxu0 %v866
    %901 = vmatprep.subr.bf16.mxu0 0
    %902 = vmatpush1.bf16.msra.mxu0 %v867
    %903 = vmatprep.subr.bf16.mxu0 0
    %904 = vmatpush1.bf16.msra.mxu0 %v868
    %905 = vmatprep.subr.bf16.mxu0 0
    %906 = vmatpush1.bf16.msra.mxu0 %v869
    %907 = vmatprep.subr.bf16.mxu0 0
    %908 = vmatpush1.bf16.msra.mxu0 %v870
    %909 = vmatprep.subr.bf16.mxu0 0
    %910 = vmatpush1.bf16.msra.mxu0 %v871
    %911 = vmatprep.subr.bf16.mxu0 0
    %912 = vmatpush1.bf16.msra.mxu0 %v872
    %913 = vmatprep.subr.bf16.mxu0 0
    %914 = vmatpush1.bf16.msra.mxu0 %v873
    %915 = vmatprep.subr.bf16.mxu0 0
    %916 = vmatpush1.bf16.msra.mxu0 %v874
    %917 = vmatprep.subr.bf16.mxu0 0
    %918 = vmatpush1.bf16.msra.mxu0 %v875
    %919 = vmatprep.subr.bf16.mxu0 0
    %920 = vmatpush1.bf16.msra.mxu0 %v876
    %921 = vmatprep.subr.bf16.mxu0 0
    %922 = vmatpush1.bf16.msra.mxu0 %v877
    %923 = vmatprep.subr.bf16.mxu0 0
    %924 = vmatpush1.bf16.msra.mxu0 %v878
    %925 = vmatprep.subr.bf16.mxu0 0
    %926 = vmatpush1.bf16.msra.mxu0 %v879
    %927 = vmatprep.subr.bf16.mxu0 0
    %928 = vmatpush1.bf16.msra.mxu0 %v880
    %929 = vmatprep.mubr.bf16.mxu0 %v796
    %930 = vmatmul.mubr.bf16.gmra.mrb[0].mxu0 %v795
    %v931 = vpop.f32.mrb[0].mxu0
    %v932 = vadd.f32 0.0, %v931
    %v933 = vpop.f32.mrb[0].mxu0
    %v934 = vpop.f32.mrb[0].mxu0
    %v935 = vpop.f32.mrb[0].mxu0
    %936 = vdwg.mxu0
    %937 = vmatprep.subr.bf16.mxu0 0
    %938 = vmatpush1.bf16.msra.mxu0 %v865
    %939 = vmatprep.subr.bf16.mxu0 0
    %940 = vmatpush1.bf16.msra.mxu0 %v866
    %941 = vmatprep.subr.bf16.mxu0 0
    %942 = vmatpush1.bf16.msra.mxu0 %v867
    %943 = vmatprep.subr.bf16.mxu0 0
    %944 = vmatpush1.bf16.msra.mxu0 %v868
    %945 = vmatprep.subr.bf16.mxu0 0
    %946 = vmatpush1.bf16.msra.mxu0 %v869
    %947 = vmatprep.subr.bf16.mxu0 0
    %948 = vmatpush1.bf16.msra.mxu0 %v870
    %949 = vmatprep.subr.bf16.mxu0 0
    %950 = vmatpush1.bf16.msra.mxu0 %v871
    %951 = vmatprep.subr.bf16.mxu0 0
    %952 = vmatpush1.bf16.msra.mxu0 %v872
    %953 = vmatprep.subr.bf16.mxu0 0
    %954 = vmatpush1.bf16.msra.mxu0 %v873
    %955 = vmatprep.subr.bf16.mxu0 0
    %956 = vmatpush1.bf16.msra.mxu0 %v874
    %957 = vmatprep.subr.bf16.mxu0 0
    %958 = vmatpush1.bf16.msra.mxu0 %v875
    %959 = vmatprep.subr.bf16.mxu0 0
    %960 = vmatpush1.bf16.msra.mxu0 %v876
    %961 = vmatprep.subr.bf16.mxu0 0
    %962 = vmatpush1.bf16.msra.mxu0 %v877
    %963 = vmatprep.subr.bf16.mxu0 0
    %964 = vmatpush1.bf16.msra.mxu0 %v878
    %965 = vmatprep.subr.bf16.mxu0 0
    %966 = vmatpush1.bf16.msra.mxu0 %v879
    %967 = vmatprep.subr.bf16.mxu0 0
    %968 = vmatpush1.bf16.msra.mxu0 %v880
    %969 = vmatprep.mubr.bf16.mxu0 %v790
    %970 = vmatmul.mubr.bf16.gmra.mrb[0].mxu0 %v789
    %v971 = vpop.f32.mrb[0].mxu0
    %v972 = vadd.f32 %v932, %v971
    %v973 = vpop.f32.mrb[0].mxu0
    %v974 = vpop.f32.mrb[0].mxu0
    %v975 = vpop.f32.mrb[0].mxu0
    %976 = vdwg.mxu0
    %v977 = vpack.c.bf16 %v799, %v799
    %v978 = vpack.c.bf16 %v800, %v800
    %979 = vmatprep.subr.bf16.mxu0 0
    %980 = vmatpush1.bf16.msra.mxu0 %v865
    %981 = vmatprep.subr.bf16.mxu0 0
    %982 = vmatpush1.bf16.msra.mxu0 %v866
    %983 = vmatprep.subr.bf16.mxu0 0
    %984 = vmatpush1.bf16.msra.mxu0 %v867
    %985 = vmatprep.subr.bf16.mxu0 0
    %986 = vmatpush1.bf16.msra.mxu0 %v868
    %987 = vmatprep.subr.bf16.mxu0 0
    %988 = vmatpush1.bf16.msra.mxu0 %v869
    %989 = vmatprep.subr.bf16.mxu0 0
    %990 = vmatpush1.bf16.msra.mxu0 %v870
    %991 = vmatprep.subr.bf16.mxu0 0
    %992 = vmatpush1.bf16.msra.mxu0 %v871
    %993 = vmatprep.subr.bf16.mxu0 0
    %994 = vmatpush1.bf16.msra.mxu0 %v872
    %995 = vmatprep.subr.bf16.mxu0 0
    %996 = vmatpush1.bf16.msra.mxu0 %v873
    %997 = vmatprep.subr.bf16.mxu0 0
    %998 = vmatpush1.bf16.msra.mxu0 %v874
    %999 = vmatprep.subr.bf16.mxu0 0
    %1000 = vmatpush1.bf16.msra.mxu0 %v875
    %1001 = vmatprep.subr.bf16.mxu0 0
    %1002 = vmatpush1.bf16.msra.mxu0 %v876
    %1003 = vmatprep.subr.bf16.mxu0 0
    %1004 = vmatpush1.bf16.msra.mxu0 %v877
    %1005 = vmatprep.subr.bf16.mxu0 0
    %1006 = vmatpush1.bf16.msra.mxu0 %v878
    %1007 = vmatprep.subr.bf16.mxu0 0
    %1008 = vmatpush1.bf16.msra.mxu0 %v879
    %1009 = vmatprep.subr.bf16.mxu0 0
    %1010 = vmatpush1.bf16.msra.mxu0 %v880
    %1011 = vmatprep.mubr.bf16.mxu0 %v978
    %1012 = vmatmul.mubr.bf16.gmra.mrb[0].mxu0 %v977
    %v1013 = vpop.f32.mrb[0].mxu0
    %v1014 = vadd.f32 0.0, %v1013
    %v1015 = vpop.f32.mrb[0].mxu0
    %v1016 = vpop.f32.mrb[0].mxu0
    %v1017 = vpop.f32.mrb[0].mxu0
    %1018 = vdwg.mxu0
    %v1019 = vadd.f32 %v972, %v1014
    %vm1020 = vcmask 523264
    %1021 = vst.msk [vmem:[#allocation9] sm:$0xff] %vm1020, %v1019
    // Predicated region
    $region34: #{tpu_custom_call.1} parent=1 // pred_check
      _
    $region35: #{tpu_custom_call.1} parent=1 // pred_check_branch
      %1023 = sbr.rel (0) target = $region37
    $region36: #{tpu_custom_call.1} parent=1 // pred_region
      %s1025 = ssub.s32 128, 128
      %1026 = vsyncadd [#allocation4], %s1025
      %s1028 = sshll.u32 [#allocation9], 4
      %s1029 = int_to_ptr.vmem [resolvable:$true] %s1028
      %1031 = dma.vmem_to_hbm [thread:$0]  %s1029, 128, %s5, [#allocation4]
    $region37: #{tpu_custom_call.1} parent=1 // pred_fallthru
      _
    // Predicated region
    $region38: #{tpu_custom_call.1} parent=1 // pred_check
      _
    $region39: #{tpu_custom_call.1} parent=1 // pred_check_branch
      %1033 = sbr.rel (0) target = $region41
    $region40: #{tpu_custom_call.1} parent=1 // pred_region
      %1034 = dma.done [#allocation4], 128
    $region41: #{tpu_custom_call.1} parent=1 // pred_fallthru
      _
    %1035 = vsyncpa [#allocation3], 1
    %1036 = vsyncpa [#allocation8], 1
    %1037 = vsyncpa [#allocation4], 1
    %1038 = vsyncpa [#allocation5], 1

</llo_original>
